<compile_context>
chip_gen: v7x
topology: tpu7x:2x2x1
jax: 0.10.0
libtpu: 0.0.40
codegen_flags: <defaults>
</compile_context>

<pallas_src>
import functools

import jax
import jax.numpy as jnp
from jax.experimental import pallas as pl
from jax.experimental.pallas import tpu as pltpu


def dual_variable_kernel(xt_ref, w1_ref, b1_ref, w2_ref, b2_ref, o_ref):
    # xt: (D, TN) batch-on-lanes tile
    # w1: (Hp, D), b1: (Hp, 1), w2: (1, Hp)  -- resident in VMEM
    # b2: (1, 1) scalar in SMEM
    # o : (1, TN) lane-dense output tile
    xt = xt_ref[...]
    w1 = w1_ref[...]
    d_in = xt.shape[0]

    # --- layer 1: h = relu(W1 @ x + b1). K = d_in is tiny -> VPU broadcast FMAs.
    h = b1_ref[...] + w1[:, 0:1] * xt[0:1, :]            # (Hp, TN)
    for d in range(1, d_in):                              # static, tiny (d_in = 2)
        h = h + w1[:, d:d + 1] * xt[d:d + 1, :]
    h = jnp.maximum(h, 0.0)                               # ReLU on VPU

    # --- layer 2: lane-dense (1, Hp) @ (Hp, TN) on the MXU -> (1, TN).
    out = jnp.dot(w2_ref[...], h, preferred_element_type=jnp.float32)
    o_ref[...] = (out + b2_ref[0, 0]).astype(o_ref.dtype)


def prepare_params(w1, b1, w2, b2, *, hidden_pad=128):
    """One-time layout glue: zero-padded, kernel-ready parameters.

    w1: (H, D), b1: (H,), w2: (1, H), b2: (1,)   (PyTorch nn.Linear convention)
    """
    H, D = w1.shape
    Hp = max(hidden_pad, ((H + 127) // 128) * 128)
    w1p = jnp.pad(w1.astype(jnp.float32), ((0, Hp - H), (0, 0)))                    # (Hp, D)
    b1p = jnp.pad(b1.astype(jnp.float32).reshape(H, 1), ((0, Hp - H), (0, 0)))      # (Hp, 1)
    w2p = jnp.pad(w2.astype(jnp.float32), ((0, 0), (0, Hp - H)))                    # (1, Hp)
    b2s = b2.astype(jnp.float32).reshape(1, 1)                                      # (1, 1) -> SMEM
    return w1p, b1p, w2p, b2s


@functools.partial(jax.jit, static_argnames=("block_n",))
def dual_variable_forward(x, params, *, block_n=1024):
    """Forward pass of DualVariable.  x: (N, input_dim) f32 -> (N, 1) f32."""
    w1p, b1p, w2p, b2s = params
    N, D = x.shape
    Hp = w1p.shape[0]
    assert block_n % 128 == 0
    assert w1p.shape == (Hp, D) and b1p.shape == (Hp, 1)
    assert w2p.shape == (1, Hp) and b2s.shape == (1, 1)

    n128 = ((N + 127) // 128) * 128           # lane-align the batch
    tn = min(block_n, n128)                   # batch tile size (lane axis)
    n_pad = ((N + tn - 1) // tn) * tn
    num_tiles = n_pad // tn

    # batch onto the lane axis + zero-pad (padded columns are sliced away below)
    xt = jnp.pad(x.astype(jnp.float32).T, ((0, 0), (0, n_pad - N)))     # (D, n_pad)

    out = pl.pallas_call(
        dual_variable_kernel,
        out_shape=jax.ShapeDtypeStruct((1, n_pad), jnp.float32),
        grid=(num_tiles,),
        in_specs=[
            pl.BlockSpec((D, tn), lambda i: (0, i)),         # x tile, batch on lanes
            pl.BlockSpec((Hp, D), lambda i: (0, 0)),         # resident W1
            pl.BlockSpec((Hp, 1), lambda i: (0, 0)),         # resident b1
            pl.BlockSpec((1, Hp), lambda i: (0, 0)),         # resident W2
            pl.BlockSpec((1, 1), lambda i: (0, 0),
                         memory_space=pltpu.MemorySpace.SMEM),  # scalar b2
        ],
        out_specs=pl.BlockSpec((1, tn), lambda i: (0, i)),   # lane-dense output tile
        compiler_params=pltpu.CompilerParams(
            dimension_semantics=("parallel",)),              # shard batch axis across TCs
        cost_estimate=pl.CostEstimate(
            flops=2 * n_pad * D * Hp + 2 * n_pad * Hp,
            transcendentals=0,
            bytes_accessed=4 * (n_pad * D + n_pad + Hp * D + 2 * Hp + 1),
        ),
    )(xt, w1p, b1p, w2p, b2s)

    return out[0, :N].reshape(N, 1)


def init_params(key, input_dim=2, hidden_dim=100):
    """Deterministic init mimicking nn.Linear (uniform in +-1/sqrt(fan_in))."""
    k1, k2, k3, k4, k5 = jax.random.split(key, 5)
    bound1 = 1.0 / jnp.sqrt(input_dim)
    w1 = jax.random.uniform(k1, (hidden_dim, input_dim), jnp.float32, -bound1, bound1)
    b1 = jax.random.uniform(k2, (hidden_dim,), jnp.float32, -bound1, bound1)
    bound2 = 1.0 / jnp.sqrt(hidden_dim)
    w2 = jax.random.uniform(k3, (1, hidden_dim), jnp.float32, -bound2, bound2)
    b2 = jax.random.uniform(k4, (1,), jnp.float32, -bound2, bound2)
    # u1 buffer from __init__ (normal_()); unused in forward, kept for parity.
    u1 = jax.random.normal(k5, (hidden_dim,), jnp.float32)
    return w1, b1, w2, b2, u1


if __name__ == "__main__":
    key = jax.random.PRNGKey(0)
    k_param, k_x, k_x2 = jax.random.split(key, 3)

    input_dim, hidden_dim, batch = 2, 100, 8
    w1, b1, w2, b2, _u1 = init_params(k_param, input_dim, hidden_dim)
    params = prepare_params(w1, b1, w2, b2)   # layout glue hoisted out of the call path

    # Small-shape run (single tile).
    x = jax.random.normal(k_x, (batch, input_dim), jnp.float32)
    out = jax.block_until_ready(dual_variable_forward(x, params))
    ref = jnp.maximum(x @ w1.T + b1, 0.0) @ w2.T + b2
    assert out.shape == (batch, 1)
    assert jnp.allclose(out, ref, atol=1e-5, rtol=1e-5)

    # Multi-tile run (exercises the batch grid, padding, resident weights).
    x2 = jax.random.normal(k_x2, (300, input_dim), jnp.float32)
    out2 = jax.block_until_ready(dual_variable_forward(x2, params, block_n=128))
    ref2 = jnp.maximum(x2 @ w1.T + b1, 0.0) @ w2.T + b2
    assert out2.shape == (300, 1)
    assert jnp.allclose(out2, ref2, atol=1e-5, rtol=1e-5)

    # TODO(synk): enforce_lipschitz / spectral_normalisation / weight_clipping are
    # training-time parameter updates outside the forward pass; not kernelized.
    print("KERNEL_OK")
</pallas_src>

<mosaic_0001>
module attributes {stable_mosaic.version = 11 : i64} {
  func.func @dual_variable_kernel(%arg0: i32, %arg1: memref<2x128xf32, #tpu.memory_space<vmem>>, %arg2: memref<128x2xf32, #tpu.memory_space<vmem>>, %arg3: memref<128x1xf32, #tpu.memory_space<vmem>>, %arg4: memref<1x128xf32, #tpu.memory_space<vmem>>, %arg5: memref<1x1xf32, #tpu.memory_space<smem>>, %arg6: memref<1x128xf32, #tpu.memory_space<vmem>>) attributes {dimension_semantics = [#tpu.dimension_semantics<parallel>], iteration_bounds = array<i64: 1>, scalar_prefetch = 0 : i64, scratch_operands = 0 : i64, tpu.core_type = #tpu.core_type<tc>, window_params = [{transform_indices = @transform_0, window_bounds = array<i64: 2, 128>}, {pipeline_mode = #tpu.pipeline_mode<synchronous>, transform_indices = @transform_1, window_bounds = array<i64: 128, 2>}, {pipeline_mode = #tpu.pipeline_mode<synchronous>, transform_indices = @transform_2, window_bounds = array<i64: 128, 1>}, {pipeline_mode = #tpu.pipeline_mode<synchronous>, transform_indices = @transform_3, window_bounds = array<i64: 1, 128>}, {transform_indices = @transform_4, window_bounds = array<i64: 1, 1>}, {transform_indices = @transform_5, window_bounds = array<i64: 1, 128>}]} {
    %c0 = arith.constant 0 : index
    %c0_0 = arith.constant 0 : index
    %0 = vector.load %arg1[%c0, %c0_0] : memref<2x128xf32, #tpu.memory_space<vmem>>, vector<2x128xf32>
    %c0_1 = arith.constant 0 : index
    %c0_2 = arith.constant 0 : index
    %1 = vector.load %arg2[%c0_1, %c0_2] : memref<128x2xf32, #tpu.memory_space<vmem>>, vector<128x2xf32>
    %c0_3 = arith.constant 0 : index
    %c0_4 = arith.constant 0 : index
    %2 = vector.load %arg3[%c0_3, %c0_4] : memref<128x1xf32, #tpu.memory_space<vmem>>, vector<128x1xf32>
    %3 = vector.extract_strided_slice %1 {offsets = [0, 0], sizes = [128, 1], strides = [1, 1]} : vector<128x2xf32> to vector<128x1xf32>
    %4 = vector.extract_strided_slice %0 {offsets = [0, 0], sizes = [1, 128], strides = [1, 1]} : vector<2x128xf32> to vector<1x128xf32>
    %5 = vector.broadcast %3 : vector<128x1xf32> to vector<128x128xf32>
    %6 = vector.broadcast %4 : vector<1x128xf32> to vector<128x128xf32>
    %7 = arith.mulf %5, %6 : vector<128x128xf32>
    %8 = vector.broadcast %2 : vector<128x1xf32> to vector<128x128xf32>
    %9 = arith.addf %8, %7 : vector<128x128xf32>
    %10 = vector.extract_strided_slice %1 {offsets = [0, 1], sizes = [128, 1], strides = [1, 1]} : vector<128x2xf32> to vector<128x1xf32>
    %11 = vector.extract_strided_slice %0 {offsets = [1, 0], sizes = [1, 128], strides = [1, 1]} : vector<2x128xf32> to vector<1x128xf32>
    %12 = vector.broadcast %10 : vector<128x1xf32> to vector<128x128xf32>
    %13 = vector.broadcast %11 : vector<1x128xf32> to vector<128x128xf32>
    %14 = arith.mulf %12, %13 : vector<128x128xf32>
    %15 = arith.addf %9, %14 : vector<128x128xf32>
    %cst = arith.constant 0.000000e+00 : f32
    %16 = vector.broadcast %cst : f32 to vector<128x128xf32>
    %17 = arith.maximumf %15, %16 : vector<128x128xf32>
    %c0_5 = arith.constant 0 : index
    %c0_6 = arith.constant 0 : index
    %18 = vector.load %arg4[%c0_5, %c0_6] : memref<1x128xf32, #tpu.memory_space<vmem>>, vector<1x128xf32>
    %cst_7 = arith.constant dense<0.000000e+00> : vector<1x128xf32>
    %19 = tpu.matmul %18, %17, %cst_7 {dimension_numbers = #tpu.dot_dimension_numbers<[1], [0], [0], [1], [0, 0, 1, 1], [], []>} : vector<1x128xf32>, vector<128x128xf32>, vector<1x128xf32> -> vector<1x128xf32>
    %c0_8 = arith.constant 0 : index
    %c0_9 = arith.constant 0 : index
    %20 = memref.load %arg5[%c0_8, %c0_9] : memref<1x1xf32, #tpu.memory_space<smem>>
    %21 = vector.broadcast %20 : f32 to vector<1x128xf32>
    %22 = arith.addf %19, %21 : vector<1x128xf32>
    %c0_10 = arith.constant 0 : index
    %c0_11 = arith.constant 0 : index
    %23 = vector.load %arg6[%c0_10, %c0_11] : memref<1x128xf32, #tpu.memory_space<vmem>>, vector<1x128xf32>
    tpu.vector_store %arg6[%c0_10, %c0_11], %22 {strides = array<i32>} : memref<1x128xf32, #tpu.memory_space<vmem>>, vector<1x128xf32>,
    return
  }
  func.func @transform_0(%arg0: i32) -> (i32, i32) {
    %c0_i32 = arith.constant 0 : i32
    %c0_i32_0 = arith.constant 0 : i32
    return %c0_i32, %arg0 : i32, i32
  }
  func.func @transform_1(%arg0: i32) -> (i32, i32) {
    %c0_i32 = arith.constant 0 : i32
    %c0_i32_0 = arith.constant 0 : i32
    %c0_i32_1 = arith.constant 0 : i32
    return %c0_i32, %c0_i32_0 : i32, i32
  }
  func.func @transform_2(%arg0: i32) -> (i32, i32) {
    %c0_i32 = arith.constant 0 : i32
    %c0_i32_0 = arith.constant 0 : i32
    %c0_i32_1 = arith.constant 0 : i32
    return %c0_i32, %c0_i32_0 : i32, i32
  }
  func.func @transform_3(%arg0: i32) -> (i32, i32) {
    %c0_i32 = arith.constant 0 : i32
    %c0_i32_0 = arith.constant 0 : i32
    %c0_i32_1 = arith.constant 0 : i32
    return %c0_i32, %c0_i32_0 : i32, i32
  }
  func.func @transform_4(%arg0: i32) -> (i32, i32) {
    %c0_i32 = arith.constant 0 : i32
    %c0_i32_0 = arith.constant 0 : i32
    %c0_i32_1 = arith.constant 0 : i32
    return %c0_i32, %c0_i32_0 : i32, i32
  }
  func.func @transform_5(%arg0: i32) -> (i32, i32) {
    %c0_i32 = arith.constant 0 : i32
    %c0_i32_0 = arith.constant 0 : i32
    return %c0_i32, %arg0 : i32, i32
  }
}

</mosaic_0001>

<llo_original>
// kernel: dual_variable_forward.1
$region0: #{dual_variable_forward.1}
  #allocation0 [shape = 'u32[]', space=smem, size = 0x4, offset = 0x4, fixed_abs, tag = 'smem constant byte address 0x4 - core index']
  #allocation1 [shape = 'u32[144,128]{1,0:T(1,128)}', space=vmem, size = 0x12000, scoped, tag = 'internal scratch']
  #allocation2 [shape = 'f32[1,1]{1,0:T(1,128)S(6)}', space=smem, size = 0x200, scoped, tag = 'scoped memory for dual_variable_forward.1']
  %s0 = inlined_call_operand.vmem [shape: f32[2,128], index: 0, kind: input, shape index: {}]
  %s1 = inlined_call_operand.vmem [shape: f32[128,2], index: 1, kind: input, shape index: {}]
  %s2 = inlined_call_operand.vmem [shape: f32[128,1], index: 2, kind: input, shape index: {}]
  %s3 = inlined_call_operand.vmem [shape: f32[1,128], index: 3, kind: input, shape index: {}]
  %s4 = inlined_call_operand.<no memory space> [shape: f32[1,1], index: 4, kind: input, shape index: {}]
  %s5 = inlined_call_operand.vmem [shape: f32[1,128], index: 5, kind: output, shape index: {}]
  %s6 = sld [smem:[#allocation0]]
  $region30: #{dual_variable_forward.1} parent=0
    _
  %s8 = ssub.s32 1, %s6
  %s9 = scalar_select 0, %s8, %s6
  %10 = sst [smem:[#allocation2]] %s4
  // Predicated region
  $region2: #{dual_variable_forward.1} parent=0 // pred_check
    _
  $region3: #{dual_variable_forward.1} parent=0 // pred_check_branch
    %12 = sbr.rel (0) target = $region5
  $region4: #{dual_variable_forward.1} parent=0 // pred_region
    _
  $region5: #{dual_variable_forward.1} parent=0 // pred_fallthru
    _
  // Predicated region
  $region6: #{dual_variable_forward.1} parent=0 // pred_check
    _
  $region7: #{dual_variable_forward.1} parent=0 // pred_check_branch
    %14 = sbr.rel (0) target = $region9
  $region8: #{dual_variable_forward.1} parent=0 // pred_region
    _
  $region9: #{dual_variable_forward.1} parent=0 // pred_fallthru
    _
  // Predicated region
  $region10: #{dual_variable_forward.1} parent=0 // pred_check
    _
  $region11: #{dual_variable_forward.1} parent=0 // pred_check_branch
    %16 = sbr.rel (0) target = $region13
  $region12: #{dual_variable_forward.1} parent=0 // pred_region
    _
  $region13: #{dual_variable_forward.1} parent=0 // pred_fallthru
    _
  // Predicated region
  $region14: #{dual_variable_forward.1} parent=0 // pred_check
    _
  $region15: #{dual_variable_forward.1} parent=0 // pred_check_branch
    %18 = sbr.rel (0) target = $region17
  $region16: #{dual_variable_forward.1} parent=0 // pred_region
    _
  $region17: #{dual_variable_forward.1} parent=0 // pred_fallthru
    _
  // Predicated region
  $region18: #{dual_variable_forward.1} parent=0 // pred_check
    _
  $region19: #{dual_variable_forward.1} parent=0 // pred_check_branch
    %20 = sbr.rel (0) target = $region21
  $region20: #{dual_variable_forward.1} parent=0 // pred_region
    _
  $region21: #{dual_variable_forward.1} parent=0 // pred_fallthru
    _
  %v21 = vld [vmem:[%s0] sm:$0x3]
  %v22 = vld [vmem:[%s1] sm:$0xff]
  %v23 = vld [vmem:[%s1 + $0x8] sm:$0xff]
  %v24 = vld [vmem:[%s1 + $0x10] sm:$0xff]
  %v25 = vld [vmem:[%s1 + $0x18] sm:$0xff]
  %v26 = vld [vmem:[%s1 + $0x20] sm:$0xff]
  %v27 = vld [vmem:[%s1 + $0x28] sm:$0xff]
  %v28 = vld [vmem:[%s1 + $0x30] sm:$0xff]
  %v29 = vld [vmem:[%s1 + $0x38] sm:$0xff]
  %v30 = vld [vmem:[%s1 + $0x40] sm:$0xff]
  %v31 = vld [vmem:[%s1 + $0x48] sm:$0xff]
  %v32 = vld [vmem:[%s1 + $0x50] sm:$0xff]
  %v33 = vld [vmem:[%s1 + $0x58] sm:$0xff]
  %v34 = vld [vmem:[%s1 + $0x60] sm:$0xff]
  %v35 = vld [vmem:[%s1 + $0x68] sm:$0xff]
  %v36 = vld [vmem:[%s1 + $0x70] sm:$0xff]
  %v37 = vld [vmem:[%s1 + $0x78] sm:$0xff]
  %v38 = vld [vmem:[%s2] sm:$0xff]
  %v39 = vld [vmem:[%s2 + $0x8] sm:$0xff]
  %v40 = vld [vmem:[%s2 + $0x10] sm:$0xff]
  %v41 = vld [vmem:[%s2 + $0x18] sm:$0xff]
  %v42 = vld [vmem:[%s2 + $0x20] sm:$0xff]
  %v43 = vld [vmem:[%s2 + $0x28] sm:$0xff]
  %v44 = vld [vmem:[%s2 + $0x30] sm:$0xff]
  %v45 = vld [vmem:[%s2 + $0x38] sm:$0xff]
  %v46 = vld [vmem:[%s2 + $0x40] sm:$0xff]
  %v47 = vld [vmem:[%s2 + $0x48] sm:$0xff]
  %v48 = vld [vmem:[%s2 + $0x50] sm:$0xff]
  %v49 = vld [vmem:[%s2 + $0x58] sm:$0xff]
  %v50 = vld [vmem:[%s2 + $0x60] sm:$0xff]
  %v51 = vld [vmem:[%s2 + $0x68] sm:$0xff]
  %v52 = vld [vmem:[%s2 + $0x70] sm:$0xff]
  %v53 = vld [vmem:[%s2 + $0x78] sm:$0xff]
  %55 = vset.pattern.permute.xlu0 0
  %56 = vperm.xlu0 %55, %v22
  %v57 = vpop.permute.xlu0 %56
  %60 = vset.pattern.permute.xlu0 0
  %61 = vperm.xlu0 %60, %v23
  %v62 = vpop.permute.xlu0 %61
  %65 = vset.pattern.permute.xlu0 0
  %66 = vperm.xlu0 %65, %v24
  %v67 = vpop.permute.xlu0 %66
  %70 = vset.pattern.permute.xlu0 0
  %71 = vperm.xlu0 %70, %v25
  %v72 = vpop.permute.xlu0 %71
  %75 = vset.pattern.permute.xlu0 0
  %76 = vperm.xlu0 %75, %v26
  %v77 = vpop.permute.xlu0 %76
  %80 = vset.pattern.permute.xlu0 0
  %81 = vperm.xlu0 %80, %v27
  %v82 = vpop.permute.xlu0 %81
  %85 = vset.pattern.permute.xlu0 0
  %86 = vperm.xlu0 %85, %v28
  %v87 = vpop.permute.xlu0 %86
  %90 = vset.pattern.permute.xlu0 0
  %91 = vperm.xlu0 %90, %v29
  %v92 = vpop.permute.xlu0 %91
  %95 = vset.pattern.permute.xlu0 0
  %96 = vperm.xlu0 %95, %v30
  %v97 = vpop.permute.xlu0 %96
  %100 = vset.pattern.permute.xlu0 0
  %101 = vperm.xlu0 %100, %v31
  %v102 = vpop.permute.xlu0 %101
  %105 = vset.pattern.permute.xlu0 0
  %106 = vperm.xlu0 %105, %v32
  %v107 = vpop.permute.xlu0 %106
  %110 = vset.pattern.permute.xlu0 0
  %111 = vperm.xlu0 %110, %v33
  %v112 = vpop.permute.xlu0 %111
  %115 = vset.pattern.permute.xlu0 0
  %116 = vperm.xlu0 %115, %v34
  %v117 = vpop.permute.xlu0 %116
  %120 = vset.pattern.permute.xlu0 0
  %121 = vperm.xlu0 %120, %v35
  %v122 = vpop.permute.xlu0 %121
  %125 = vset.pattern.permute.xlu0 0
  %126 = vperm.xlu0 %125, %v36
  %v127 = vpop.permute.xlu0 %126
  %130 = vset.pattern.permute.xlu0 0
  %131 = vperm.xlu0 %130, %v37
  %v132 = vpop.permute.xlu0 %131
  %v134 = vlaneseq
  %v135 = vshrl.u32 %v134, 7
  %v136 = vsub.s32 0, %v135
  %v137 = vrot.slane %v21, %v136
  %v138 = vmul.f32 %v57, %v137
  %v139 = vmul.f32 %v62, %v137
  %v140 = vmul.f32 %v67, %v137
  %v141 = vmul.f32 %v72, %v137
  %v142 = vmul.f32 %v77, %v137
  %v143 = vmul.f32 %v82, %v137
  %v144 = vmul.f32 %v87, %v137
  %v145 = vmul.f32 %v92, %v137
  %v146 = vmul.f32 %v97, %v137
  %v147 = vmul.f32 %v102, %v137
  %v148 = vmul.f32 %v107, %v137
  %v149 = vmul.f32 %v112, %v137
  %v150 = vmul.f32 %v117, %v137
  %v151 = vmul.f32 %v122, %v137
  %v152 = vmul.f32 %v127, %v137
  %v153 = vmul.f32 %v132, %v137
  %155 = vset.pattern.permute.xlu0 0
  %156 = vperm.xlu0 %155, %v38
  %v157 = vpop.permute.xlu0 %156
  %160 = vset.pattern.permute.xlu0 0
  %161 = vperm.xlu0 %160, %v39
  %v162 = vpop.permute.xlu0 %161
  %165 = vset.pattern.permute.xlu0 0
  %166 = vperm.xlu0 %165, %v40
  %v167 = vpop.permute.xlu0 %166
  %170 = vset.pattern.permute.xlu0 0
  %171 = vperm.xlu0 %170, %v41
  %v172 = vpop.permute.xlu0 %171
  %175 = vset.pattern.permute.xlu0 0
  %176 = vperm.xlu0 %175, %v42
  %v177 = vpop.permute.xlu0 %176
  %180 = vset.pattern.permute.xlu0 0
  %181 = vperm.xlu0 %180, %v43
  %v182 = vpop.permute.xlu0 %181
  %185 = vset.pattern.permute.xlu0 0
  %186 = vperm.xlu0 %185, %v44
  %v187 = vpop.permute.xlu0 %186
  %190 = vset.pattern.permute.xlu0 0
  %191 = vperm.xlu0 %190, %v45
  %v192 = vpop.permute.xlu0 %191
  %195 = vset.pattern.permute.xlu0 0
  %196 = vperm.xlu0 %195, %v46
  %v197 = vpop.permute.xlu0 %196
  %200 = vset.pattern.permute.xlu0 0
  %201 = vperm.xlu0 %200, %v47
  %v202 = vpop.permute.xlu0 %201
  %205 = vset.pattern.permute.xlu0 0
  %206 = vperm.xlu0 %205, %v48
  %v207 = vpop.permute.xlu0 %206
  %210 = vset.pattern.permute.xlu0 0
  %211 = vperm.xlu0 %210, %v49
  %v212 = vpop.permute.xlu0 %211
  %215 = vset.pattern.permute.xlu0 0
  %216 = vperm.xlu0 %215, %v50
  %v217 = vpop.permute.xlu0 %216
  %220 = vset.pattern.permute.xlu0 0
  %221 = vperm.xlu0 %220, %v51
  %v222 = vpop.permute.xlu0 %221
  %225 = vset.pattern.permute.xlu0 0
  %226 = vperm.xlu0 %225, %v52
  %v227 = vpop.permute.xlu0 %226
  %230 = vset.pattern.permute.xlu0 0
  %231 = vperm.xlu0 %230, %v53
  %v232 = vpop.permute.xlu0 %231
  %v234 = vadd.f32 %v157, %v138
  %v235 = vadd.f32 %v162, %v139
  %v236 = vadd.f32 %v167, %v140
  %v237 = vadd.f32 %v172, %v141
  %v238 = vadd.f32 %v177, %v142
  %v239 = vadd.f32 %v182, %v143
  %v240 = vadd.f32 %v187, %v144
  %v241 = vadd.f32 %v192, %v145
  %v242 = vadd.f32 %v197, %v146
  %v243 = vadd.f32 %v202, %v147
  %v244 = vadd.f32 %v207, %v148
  %v245 = vadd.f32 %v212, %v149
  %v246 = vadd.f32 %v217, %v150
  %v247 = vadd.f32 %v222, %v151
  %v248 = vadd.f32 %v227, %v152
  %v249 = vadd.f32 %v232, %v153
  %250 = vset.pattern.permute.xlu0 1
  %251 = vperm.xlu0 %250, %v22
  %v252 = vpop.permute.xlu0 %251
  %254 = vset.pattern.permute.xlu0 1
  %255 = vperm.xlu0 %254, %v23
  %v256 = vpop.permute.xlu0 %255
  %258 = vset.pattern.permute.xlu0 1
  %259 = vperm.xlu0 %258, %v24
  %v260 = vpop.permute.xlu0 %259
  %262 = vset.pattern.permute.xlu0 1
  %263 = vperm.xlu0 %262, %v25
  %v264 = vpop.permute.xlu0 %263
  %266 = vset.pattern.permute.xlu0 1
  %267 = vperm.xlu0 %266, %v26
  %v268 = vpop.permute.xlu0 %267
  %270 = vset.pattern.permute.xlu0 1
  %271 = vperm.xlu0 %270, %v27
  %v272 = vpop.permute.xlu0 %271
  %274 = vset.pattern.permute.xlu0 1
  %275 = vperm.xlu0 %274, %v28
  %v276 = vpop.permute.xlu0 %275
  %278 = vset.pattern.permute.xlu0 1
  %279 = vperm.xlu0 %278, %v29
  %v280 = vpop.permute.xlu0 %279
  %282 = vset.pattern.permute.xlu0 1
  %283 = vperm.xlu0 %282, %v30
  %v284 = vpop.permute.xlu0 %283
  %286 = vset.pattern.permute.xlu0 1
  %287 = vperm.xlu0 %286, %v31
  %v288 = vpop.permute.xlu0 %287
  %290 = vset.pattern.permute.xlu0 1
  %291 = vperm.xlu0 %290, %v32
  %v292 = vpop.permute.xlu0 %291
  %294 = vset.pattern.permute.xlu0 1
  %295 = vperm.xlu0 %294, %v33
  %v296 = vpop.permute.xlu0 %295
  %298 = vset.pattern.permute.xlu0 1
  %299 = vperm.xlu0 %298, %v34
  %v300 = vpop.permute.xlu0 %299
  %302 = vset.pattern.permute.xlu0 1
  %303 = vperm.xlu0 %302, %v35
  %v304 = vpop.permute.xlu0 %303
  %306 = vset.pattern.permute.xlu0 1
  %307 = vperm.xlu0 %306, %v36
  %v308 = vpop.permute.xlu0 %307
  %310 = vset.pattern.permute.xlu0 1
  %311 = vperm.xlu0 %310, %v37
  %v312 = vpop.permute.xlu0 %311
  %v314 = vlaneseq
  %v315 = vshrl.u32 %v314, 7
  %v316 = vsub.s32 1, %v315
  %v317 = vrot.slane %v21, %v316
  %v318 = vmul.f32 %v252, %v317
  %v319 = vmul.f32 %v256, %v317
  %v320 = vmul.f32 %v260, %v317
  %v321 = vmul.f32 %v264, %v317
  %v322 = vmul.f32 %v268, %v317
  %v323 = vmul.f32 %v272, %v317
  %v324 = vmul.f32 %v276, %v317
  %v325 = vmul.f32 %v280, %v317
  %v326 = vmul.f32 %v284, %v317
  %v327 = vmul.f32 %v288, %v317
  %v328 = vmul.f32 %v292, %v317
  %v329 = vmul.f32 %v296, %v317
  %v330 = vmul.f32 %v300, %v317
  %v331 = vmul.f32 %v304, %v317
  %v332 = vmul.f32 %v308, %v317
  %v333 = vmul.f32 %v312, %v317
  %v334 = vadd.f32 %v234, %v318
  %v335 = vadd.f32 %v235, %v319
  %v336 = vadd.f32 %v236, %v320
  %v337 = vadd.f32 %v237, %v321
  %v338 = vadd.f32 %v238, %v322
  %v339 = vadd.f32 %v239, %v323
  %v340 = vadd.f32 %v240, %v324
  %v341 = vadd.f32 %v241, %v325
  %v342 = vadd.f32 %v242, %v326
  %v343 = vadd.f32 %v243, %v327
  %v344 = vadd.f32 %v244, %v328
  %v345 = vadd.f32 %v245, %v329
  %v346 = vadd.f32 %v246, %v330
  %v347 = vadd.f32 %v247, %v331
  %v348 = vadd.f32 %v248, %v332
  %v349 = vadd.f32 %v249, %v333
  %v350 = vmax.f32 %v334, 0.0
  %v351 = vmax.f32 %v335, 0.0
  %v352 = vmax.f32 %v336, 0.0
  %v353 = vmax.f32 %v337, 0.0
  %v354 = vmax.f32 %v338, 0.0
  %v355 = vmax.f32 %v339, 0.0
  %v356 = vmax.f32 %v340, 0.0
  %v357 = vmax.f32 %v341, 0.0
  %v358 = vmax.f32 %v342, 0.0
  %v359 = vmax.f32 %v343, 0.0
  %v360 = vmax.f32 %v344, 0.0
  %v361 = vmax.f32 %v345, 0.0
  %v362 = vmax.f32 %v346, 0.0
  %v363 = vmax.f32 %v347, 0.0
  %v364 = vmax.f32 %v348, 0.0
  %v365 = vmax.f32 %v349, 0.0
  %v366 = vld [vmem:[%s3] sm:$0x1]
  %s367 = sld [smem:[#allocation2]]
  %v368 = vstv %s367
  %369 = vmatprep.subr.mxu0 0.0
  %370 = vmatpush1.msra.mxu0 %v350
  %371 = vmatprep.subr.mxu0 0.0
  %372 = vmatpush1.msra.mxu0 %v351
  %373 = vmatprep.subr.mxu0 0.0
  %374 = vmatpush1.msra.mxu0 %v352
  %375 = vmatprep.subr.mxu0 0.0
  %376 = vmatpush1.msra.mxu0 %v353
  %377 = vmatprep.subr.mxu0 0.0
  %378 = vmatpush1.msra.mxu0 %v354
  %379 = vmatprep.subr.mxu0 0.0
  %380 = vmatpush1.msra.mxu0 %v355
  %381 = vmatprep.subr.mxu0 0.0
  %382 = vmatpush1.msra.mxu0 %v356
  %383 = vmatprep.subr.mxu0 0.0
  %384 = vmatpush1.msra.mxu0 %v357
  %385 = vmatprep.subr.mxu0 0.0
  %386 = vmatpush1.msra.mxu0 %v358
  %387 = vmatprep.subr.mxu0 0.0
  %388 = vmatpush1.msra.mxu0 %v359
  %389 = vmatprep.subr.mxu0 0.0
  %390 = vmatpush1.msra.mxu0 %v360
  %391 = vmatprep.subr.mxu0 0.0
  %392 = vmatpush1.msra.mxu0 %v361
  %393 = vmatprep.subr.mxu0 0.0
  %394 = vmatpush1.msra.mxu0 %v362
  %395 = vmatprep.subr.mxu0 0.0
  %396 = vmatpush1.msra.mxu0 %v363
  %397 = vmatprep.subr.mxu0 0.0
  %398 = vmatpush1.msra.mxu0 %v364
  %399 = vmatprep.subr.mxu0 0.0
  %400 = vmatpush1.msra.mxu0 %v365
  %401 = vmatprep.subr.mxu0 0.0
  %402 = vmatpush1.msra.mxu0 0.0
  %403 = vmatprep.subr.mxu0 0.0
  %404 = vmatpush1.msra.mxu0 0.0
  %405 = vmatprep.subr.mxu0 0.0
  %406 = vmatpush1.msra.mxu0 0.0
  %407 = vmatprep.subr.mxu0 0.0
  %408 = vmatpush1.msra.mxu0 0.0
  %409 = vmatprep.subr.mxu0 0.0
  %410 = vmatpush1.msra.mxu0 0.0
  %411 = vmatprep.subr.mxu0 0.0
  %412 = vmatpush1.msra.mxu0 0.0
  %413 = vmatprep.subr.mxu0 0.0
  %414 = vmatpush1.msra.mxu0 0.0
  %415 = vmatprep.subr.mxu0 0.0
  %416 = vmatpush1.msra.mxu0 0.0
  %417 = vmatprep.subr.mxu0 0.0
  %418 = vmatpush1.msra.mxu0 0.0
  %419 = vmatprep.subr.mxu0 0.0
  %420 = vmatpush1.msra.mxu0 0.0
  %421 = vmatprep.subr.mxu0 0.0
  %422 = vmatpush1.msra.mxu0 0.0
  %423 = vmatprep.subr.mxu0 0.0
  %424 = vmatpush1.msra.mxu0 0.0
  %425 = vmatprep.subr.mxu0 0.0
  %426 = vmatpush1.msra.mxu0 0.0
  %427 = vmatprep.subr.mxu0 0.0
  %428 = vmatpush1.msra.mxu0 0.0
  %429 = vmatprep.subr.mxu0 0.0
  %430 = vmatpush1.msra.mxu0 0.0
  %431 = vmatprep.subr.mxu0 0.0
  %432 = vmatpush1.msra.mxu0 0.0
  %433 = vmatprep.mubr.f32.mxu0 0.0
  %434 = vmatmul.mubr.f32.gmra.mrb[0].mxu0 %v366
  %v435 = vpop.f32.mrb[0].mxu0
  %v436 = vadd.f32 %v368, %v435
  %v437 = vpop.f32.mrb[0].mxu0
  %438 = vdwg.mxu0
  %439 = vst [vmem:[%s5] sm:$0x1] %v436
  // Predicated region
  $region22: #{dual_variable_forward.1} parent=0 // pred_check
    _
  $region23: #{dual_variable_forward.1} parent=0 // pred_check_branch
    %441 = sbr.rel (0) target = $region25
  $region24: #{dual_variable_forward.1} parent=0 // pred_region
    _
  $region25: #{dual_variable_forward.1} parent=0 // pred_fallthru
    _
  // Predicated region
  $region26: #{dual_variable_forward.1} parent=0 // pred_check
    _
  $region27: #{dual_variable_forward.1} parent=0 // pred_check_branch
    %443 = sbr.rel (0) target = $region29
  $region28: #{dual_variable_forward.1} parent=0 // pred_region
    _
  $region29: #{dual_variable_forward.1} parent=0 // pred_fallthru
    _

</llo_original>
